<compile_context>
chip_gen: v6e
topology: v6e:2x2x1
jax: 0.10.0
libtpu: 0.0.40
codegen_flags: <defaults>
</compile_context>

<pallas_src>
import jax
import jax.numpy as jnp
from jax.experimental import pallas as pl
from jax.experimental.pallas import tpu as pltpu

NEG_SLOPE = 0.01  # nn.LeakyReLU default negative_slope


def _leaky_relu(x):
    return jnp.where(x > 0, x, NEG_SLOPE * x)


def _round_up(n, m):
    return ((n + m - 1) // m) * m


def _pad2(a, rows, cols):
    return jnp.pad(a, ((0, rows - a.shape[0]), (0, cols - a.shape[1])))


# ----------------------------------------------------------------------------
# Kernel
# ----------------------------------------------------------------------------
def resblock_kernel(x_ref, w1_ref, b1_ref, w2_ref, b2_ref, o_ref):
    x = x_ref[...]                                   # (TM, Dp), compute dtype

    # out = leaky_relu(linear1(x))   -- MXU matmul, f32 accumulation
    h = jnp.dot(x, w1_ref[...], preferred_element_type=jnp.float32)
    h = _leaky_relu(h + b1_ref[...])

    # out = linear2(out)             -- cast back to compute dtype for the MXU
    h = jnp.dot(h.astype(w2_ref.dtype), w2_ref[...],
                preferred_element_type=jnp.float32)

    # out += 0.1 * x ; out = leaky_relu(out)   (VPU epilogue, free under MXU)
    h = h + b2_ref[...] + 0.1 * x.astype(jnp.float32)
    o_ref[...] = _leaky_relu(h).astype(o_ref.dtype)


# ----------------------------------------------------------------------------
# One-time parameter preparation (hoisted out of the per-call path)
# ----------------------------------------------------------------------------
def prepare_params(w1, b1, w2, b2, *, compute_dtype=jnp.bfloat16):
    """Transpose / zero-pad / cast the ResBlock weights once.

    w1, w2: (dim, dim) PyTorch-style (out, in).  b1, b2: (dim,).
    Returns a dict of arrays to pass to resblock_apply; reuse it across calls.
    Zero padding is mathematically inert (padded cols stay exactly 0).
    """
    D = w1.shape[0]
    D_pad = _round_up(D, 128)                       # lane-dense feature dim
    cdt = jnp.dtype(compute_dtype)
    w1p = _pad2(jnp.asarray(w1).T, D_pad, D_pad).astype(cdt)   # (in, out): x @ W
    w2p = _pad2(jnp.asarray(w2).T, D_pad, D_pad).astype(cdt)
    b1p = _pad2(jnp.asarray(b1, dtype=jnp.float32).reshape(1, D), 1, D_pad)
    b2p = _pad2(jnp.asarray(b2, dtype=jnp.float32).reshape(1, D), 1, D_pad)
    return {"w1": w1p, "b1": b1p, "w2": w2p, "b2": b2p}


# ----------------------------------------------------------------------------
# Forward pass (jit-compatible, no host syncs)
# ----------------------------------------------------------------------------
def resblock_apply(x, params, *, block_m=256, out_dtype=None):
    """x: (B, D); params from prepare_params(). Returns (B, D)."""
    B, D = x.shape
    w1p, b1p, w2p, b2p = params["w1"], params["b1"], params["w2"], params["b2"]
    D_pad = w1p.shape[0]
    assert w1p.shape == (D_pad, D_pad) and w2p.shape == (D_pad, D_pad)
    assert _round_up(D, 128) == D_pad, "params were prepared for a different dim"

    cdt = jnp.dtype(w1p.dtype)
    out_dtype = jnp.dtype(out_dtype) if out_dtype is not None else jnp.dtype(x.dtype)
    cbytes = cdt.itemsize
    obytes = out_dtype.itemsize

    # Batch tile: multiple of the packed sublane tile (8 f32 / 16 bf16 / 32 i8).
    min_tm = 8 * max(1, 4 // cbytes)
    TM = min(_round_up(block_m, min_tm), _round_up(B, min_tm))
    if TM > 128:
        # Keep ~8 grid steps (>= 4 per v7x core) so x/out DMAs pipeline, but
        # never shrink the M tile below 128 rows.
        TM = max(128, min(TM, _round_up(pl.cdiv(B, 8), min_tm)))
    B_pad = _round_up(B, TM)
    grid = (B_pad // TM,)

    # Pad/cast x only when actually needed (skips an extra HBM pass otherwise).
    xp = x
    if xp.dtype != cdt:
        xp = xp.astype(cdt)
    if (B_pad, D_pad) != (B, D):
        xp = jnp.pad(xp, ((0, B_pad - B), (0, D_pad - D)))

    # VMEM budget: resident weights (worst-case double-buffered) + double-
    # buffered activation/output tiles + biases, with headroom; clamped to a
    # per-generation ceiling (keep ~20% of physical VMEM for compiler scratch).
    w_foot = 2 * D_pad * D_pad * cbytes * 2
    a_foot = 2 * TM * D_pad * cbytes
    o_foot = 2 * TM * D_pad * obytes
    b_foot = 2 * 2 * D_pad * 4
    vmem_limit = int(1.25 * (w_foot + a_foot + o_foot + b_foot)) + (8 << 20)
    try:
        vmem_cap = pltpu.get_tpu_info().vmem_capacity_bytes
    except Exception:
        vmem_cap = 64 << 20                       # conservative (v7x per-core)
    vmem_limit = max(32 << 20, min(vmem_limit, int(vmem_cap * 0.8)))

    cost = pl.CostEstimate(
        flops=4 * B_pad * D_pad * D_pad,          # two (TM,Dp)x(Dp,Dp) matmuls
        transcendentals=0,
        bytes_accessed=(2 * D_pad * D_pad * cbytes   # weights
                        + B_pad * D_pad * cbytes     # x
                        + B_pad * D_pad * obytes     # out
                        + 2 * D_pad * 4),            # biases
    )

    x_spec = pl.BlockSpec((TM, D_pad), lambda i: (i, 0))
    o_spec = pl.BlockSpec((TM, D_pad), lambda i: (i, 0))
    # Constant block index -> weights/biases stay VMEM-resident across steps.
    w_spec = pl.BlockSpec((D_pad, D_pad), lambda i: (0, 0))
    b_spec = pl.BlockSpec((1, D_pad), lambda i: (0, 0))

    out = pl.pallas_call(
        resblock_kernel,
        out_shape=jax.ShapeDtypeStruct((B_pad, D_pad), out_dtype),
        grid=grid,
        in_specs=[x_spec, w_spec, b_spec, w_spec, b_spec],
        out_specs=o_spec,
        compiler_params=pltpu.CompilerParams(
            dimension_semantics=("parallel",),     # megacore sharding on v7x
            vmem_limit_bytes=vmem_limit,
        ),
        cost_estimate=cost,
    )(xp, w1p, b1p, w2p, b2p)

    if (B_pad, D_pad) != (B, D):
        out = out[:B, :D]
    return out


def resblock(x, w1, b1, w2, b2, *, compute_dtype=jnp.bfloat16,
             block_m=256, out_dtype=None):
    """Convenience one-shot wrapper. For repeated calls, use prepare_params()
    once and call resblock_apply() directly (avoids re-padding the weights)."""
    params = prepare_params(w1, b1, w2, b2, compute_dtype=compute_dtype)
    return resblock_apply(x, params, block_m=block_m, out_dtype=out_dtype)


def resblock_ref(x, w1, b1, w2, b2):
    """Pure-JAX reference mirroring the PyTorch forward."""
    def lrelu(v):
        return jnp.where(v > 0, v, NEG_SLOPE * v)
    out = x @ w1.T + b1
    out = lrelu(out)
    out = out @ w2.T + b2
    out = out + 0.1 * x
    return lrelu(out)


if __name__ == "__main__":
    key = jax.random.PRNGKey(0)
    keys = jax.random.split(key, 10)

    # ---- small demo shapes matching the module (hidden dim 32, batch 8) ----
    B, D = 8, 32
    bound = 1.0 / (D ** 0.5)
    x = jax.random.normal(keys[0], (B, D), dtype=jnp.float32)
    w1 = jax.random.uniform(keys[1], (D, D), minval=-bound, maxval=bound, dtype=jnp.float32)
    b1 = jax.random.uniform(keys[2], (D,), minval=-bound, maxval=bound, dtype=jnp.float32)
    w2 = jax.random.uniform(keys[3], (D, D), minval=-bound, maxval=bound, dtype=jnp.float32)
    b2 = jax.random.uniform(keys[4], (D,), minval=-bound, maxval=bound, dtype=jnp.float32)
    ref = resblock_ref(x, w1, b1, w2, b2)

    # 1) f32 compute path: exact match against the reference.
    params_f32 = prepare_params(w1, b1, w2, b2, compute_dtype=jnp.float32)
    out = jax.block_until_ready(resblock_apply(x, params_f32))
    assert out.shape == (B, D)
    assert jnp.allclose(out, ref, atol=1e-5, rtol=1e-5), "f32 mismatch vs reference"

    # 2) default bf16 MXU path, jitted (library function has no host syncs).
    apply_jit = jax.jit(resblock_apply, static_argnames=("block_m", "out_dtype"))
    params_bf16 = prepare_params(w1, b1, w2, b2)           # compute_dtype=bf16
    out_bf = jax.block_until_ready(apply_jit(x, params_bf16))

    def _rt(a):  # bf16 operand rounding, f32 math thereafter (matches kernel)
        return a.astype(jnp.bfloat16).astype(jnp.float32)
    ref_bf = resblock_ref(_rt(x), _rt(w1), b1, _rt(w2), b2)
    assert out_bf.shape == (B, D) and out_bf.dtype == x.dtype
    assert jnp.allclose(out_bf, ref_bf, atol=3e-2, rtol=3e-2), "bf16 mismatch vs reference"

    # ---- larger tiled check: batch grid + bf16 MXU operands + bf16 output ----
    B2, D2 = 500, 384
    bound2 = 1.0 / (D2 ** 0.5)
    x2 = jax.random.normal(keys[5], (B2, D2), dtype=jnp.float32)
    w1_2 = jax.random.uniform(keys[6], (D2, D2), minval=-bound2, maxval=bound2, dtype=jnp.float32)
    b1_2 = jax.random.uniform(keys[7], (D2,), minval=-bound2, maxval=bound2, dtype=jnp.float32)
    w2_2 = jax.random.uniform(keys[8], (D2, D2), minval=-bound2, maxval=bound2, dtype=jnp.float32)
    b2_2 = jax.random.uniform(keys[9], (D2,), minval=-bound2, maxval=bound2, dtype=jnp.float32)

    params2 = prepare_params(w1_2, b1_2, w2_2, b2_2)       # prepared once, reused
    out2 = apply_jit(x2, params2, block_m=256, out_dtype=jnp.bfloat16)
    out2 = jax.block_until_ready(out2)

    ref2 = resblock_ref(_rt(x2), _rt(w1_2), b1_2, _rt(w2_2), b2_2)
    assert out2.shape == (B2, D2) and out2.dtype == jnp.bfloat16
    assert jnp.allclose(out2.astype(jnp.float32), ref2, atol=5e-2, rtol=5e-2), \
        "bf16 large-shape mismatch vs reference"

    print("KERNEL_OK")
</pallas_src>

<mosaic_0001>
module attributes {stable_mosaic.version = 11 : i64} {
  func.func @resblock_kernel(%arg0: i32, %arg1: memref<8x128xf32, #tpu.memory_space<vmem>>, %arg2: memref<128x128xf32, #tpu.memory_space<vmem>>, %arg3: memref<1x128xf32, #tpu.memory_space<vmem>>, %arg4: memref<128x128xf32, #tpu.memory_space<vmem>>, %arg5: memref<1x128xf32, #tpu.memory_space<vmem>>, %arg6: memref<8x128xf32, #tpu.memory_space<vmem>>) attributes {dimension_semantics = [#tpu.dimension_semantics<parallel>], iteration_bounds = array<i64: 1>, scalar_prefetch = 0 : i64, scratch_operands = 0 : i64, tpu.core_type = #tpu.core_type<tc>, window_params = [{transform_indices = @transform_0, window_bounds = array<i64: 8, 128>}, {pipeline_mode = #tpu.pipeline_mode<synchronous>, transform_indices = @transform_1, window_bounds = array<i64: 128, 128>}, {pipeline_mode = #tpu.pipeline_mode<synchronous>, transform_indices = @transform_2, window_bounds = array<i64: 1, 128>}, {pipeline_mode = #tpu.pipeline_mode<synchronous>, transform_indices = @transform_3, window_bounds = array<i64: 128, 128>}, {pipeline_mode = #tpu.pipeline_mode<synchronous>, transform_indices = @transform_4, window_bounds = array<i64: 1, 128>}, {transform_indices = @transform_5, window_bounds = array<i64: 8, 128>}]} {
    %c0 = arith.constant 0 : index
    %c0_0 = arith.constant 0 : index
    %0 = vector.load %arg1[%c0, %c0_0] : memref<8x128xf32, #tpu.memory_space<vmem>>, vector<8x128xf32>
    %c0_1 = arith.constant 0 : index
    %c0_2 = arith.constant 0 : index
    %1 = vector.load %arg2[%c0_1, %c0_2] : memref<128x128xf32, #tpu.memory_space<vmem>>, vector<128x128xf32>
    %cst = arith.constant dense<0.000000e+00> : vector<8x128xf32>
    %2 = tpu.matmul %0, %1, %cst {dimension_numbers = #tpu.dot_dimension_numbers<[1], [0], [0], [1], [0, 0, 1, 1], [], []>} : vector<8x128xf32>, vector<128x128xf32>, vector<8x128xf32> -> vector<8x128xf32>
    %c0_3 = arith.constant 0 : index
    %c0_4 = arith.constant 0 : index
    %3 = vector.load %arg3[%c0_3, %c0_4] : memref<1x128xf32, #tpu.memory_space<vmem>>, vector<1x128xf32>
    %4 = vector.broadcast %3 : vector<1x128xf32> to vector<8x128xf32>
    %5 = arith.addf %2, %4 : vector<8x128xf32>
    %cst_5 = arith.constant 0.000000e+00 : f32
    %6 = vector.broadcast %cst_5 : f32 to vector<8x128xf32>
    %7 = arith.cmpf ogt, %5, %6 : vector<8x128xf32>
    %cst_6 = arith.constant 0.00999999977 : f32
    %8 = vector.broadcast %cst_6 : f32 to vector<8x128xf32>
    %9 = arith.mulf %8, %5 : vector<8x128xf32>
    %10 = arith.select %7, %5, %9 : vector<8x128xi1>, vector<8x128xf32>
    %c0_7 = arith.constant 0 : index
    %c0_8 = arith.constant 0 : index
    %11 = vector.load %arg4[%c0_7, %c0_8] : memref<128x128xf32, #tpu.memory_space<vmem>>, vector<128x128xf32>
    %cst_9 = arith.constant dense<0.000000e+00> : vector<8x128xf32>
    %12 = tpu.matmul %10, %11, %cst_9 {dimension_numbers = #tpu.dot_dimension_numbers<[1], [0], [0], [1], [0, 0, 1, 1], [], []>} : vector<8x128xf32>, vector<128x128xf32>, vector<8x128xf32> -> vector<8x128xf32>
    %c0_10 = arith.constant 0 : index
    %c0_11 = arith.constant 0 : index
    %13 = vector.load %arg5[%c0_10, %c0_11] : memref<1x128xf32, #tpu.memory_space<vmem>>, vector<1x128xf32>
    %14 = vector.broadcast %13 : vector<1x128xf32> to vector<8x128xf32>
    %15 = arith.addf %12, %14 : vector<8x128xf32>
    %cst_12 = arith.constant 1.000000e-01 : f32
    %16 = vector.broadcast %cst_12 : f32 to vector<8x128xf32>
    %17 = arith.mulf %16, %0 : vector<8x128xf32>
    %18 = arith.addf %15, %17 : vector<8x128xf32>
    %cst_13 = arith.constant 0.000000e+00 : f32
    %19 = vector.broadcast %cst_13 : f32 to vector<8x128xf32>
    %20 = arith.cmpf ogt, %18, %19 : vector<8x128xf32>
    %cst_14 = arith.constant 0.00999999977 : f32
    %21 = vector.broadcast %cst_14 : f32 to vector<8x128xf32>
    %22 = arith.mulf %21, %18 : vector<8x128xf32>
    %23 = arith.select %20, %18, %22 : vector<8x128xi1>, vector<8x128xf32>
    %c0_15 = arith.constant 0 : index
    %c0_16 = arith.constant 0 : index
    %24 = vector.load %arg6[%c0_15, %c0_16] : memref<8x128xf32, #tpu.memory_space<vmem>>, vector<8x128xf32>
    tpu.vector_store %arg6[%c0_15, %c0_16], %23 {strides = array<i32>} : memref<8x128xf32, #tpu.memory_space<vmem>>, vector<8x128xf32>,
    return
  }
  func.func @transform_0(%arg0: i32) -> (i32, i32) {
    %c0_i32 = arith.constant 0 : i32
    %c0_i32_0 = arith.constant 0 : i32
    return %arg0, %c0_i32 : i32, i32
  }
  func.func @transform_1(%arg0: i32) -> (i32, i32) {
    %c0_i32 = arith.constant 0 : i32
    %c0_i32_0 = arith.constant 0 : i32
    %c0_i32_1 = arith.constant 0 : i32
    return %c0_i32, %c0_i32_0 : i32, i32
  }
  func.func @transform_2(%arg0: i32) -> (i32, i32) {
    %c0_i32 = arith.constant 0 : i32
    %c0_i32_0 = arith.constant 0 : i32
    %c0_i32_1 = arith.constant 0 : i32
    return %c0_i32, %c0_i32_0 : i32, i32
  }
  func.func @transform_3(%arg0: i32) -> (i32, i32) {
    %c0_i32 = arith.constant 0 : i32
    %c0_i32_0 = arith.constant 0 : i32
    %c0_i32_1 = arith.constant 0 : i32
    return %c0_i32, %c0_i32_0 : i32, i32
  }
  func.func @transform_4(%arg0: i32) -> (i32, i32) {
    %c0_i32 = arith.constant 0 : i32
    %c0_i32_0 = arith.constant 0 : i32
    %c0_i32_1 = arith.constant 0 : i32
    return %c0_i32, %c0_i32_0 : i32, i32
  }
  func.func @transform_5(%arg0: i32) -> (i32, i32) {
    %c0_i32 = arith.constant 0 : i32
    %c0_i32_0 = arith.constant 0 : i32
    return %arg0, %c0_i32 : i32, i32
  }
}

</mosaic_0001>

<llo_original>
// kernel: tpu_custom_call.1
$region0: #{tpu_custom_call.1}
  #allocation0 [shape = 'u32[]', space=smem, size = 0x4, offset = 0x4, fixed_abs, tag = 'smem constant byte address 0x4 - core index']
  #allocation1 [shape = 'u32[144,128]{1,0:T(1,128)}', space=vmem, size = 0x12000, scoped, tag = 'internal scratch']
  %s0 = inlined_call_operand.hbm [shape: f32[8,128], index: 0, kind: input, shape index: {}]
  %s1 = inlined_call_operand.hbm [shape: f32[128,128], index: 1, kind: input, shape index: {}]
  %s2 = inlined_call_operand.vmem [shape: f32[1,128], index: 2, kind: input, shape index: {}]
  %s3 = inlined_call_operand.hbm [shape: f32[128,128], index: 3, kind: input, shape index: {}]
  %s4 = inlined_call_operand.vmem [shape: f32[1,128], index: 4, kind: input, shape index: {}]
  %s5 = inlined_call_operand.hbm [shape: f32[8,128], index: 5, kind: output, shape index: {}]
  %s6 = sld [smem:[#allocation0]]
  $region42: #{tpu_custom_call.1} parent=0
    _
  %s8 = ssub.s32 1, %s6
  %s9 = scalar_select 0, %s8, %s6
  $region1: #{tpu_custom_call.1} parent=0
    #allocation2 [shape = 'u8[4096]{0}', space=vmem, size = 0x1000, scoped, tag = 'input window, operand 0, single buffered']
    #allocation3 [shape = 's32[1]{0}', space=sflag, size = 0x4, scoped, tag = 'scoped memory for tpu_custom_call.1']
    #allocation4 [shape = 's32[1]{0}', space=sflag, size = 0x4, scoped, tag = 'scoped memory for tpu_custom_call.1']
    #allocation5 [shape = 'u8[65536]{0}', space=vmem, size = 0x10000, scoped, tag = 'input window, operand 1, single buffered']
    #allocation6 [shape = 's32[1]{0}', space=sflag, size = 0x4, scoped, tag = 'scoped memory for tpu_custom_call.1']
    #allocation7 [shape = 'u8[65536]{0}', space=vmem, size = 0x10000, scoped, tag = 'input window, operand 3, single buffered']
    #allocation8 [shape = 'u8[4096]{0}', space=vmem, size = 0x1000, scoped, tag = 'output window, operand 0, single buffered']
    %10 = vsyncpa [#allocation3], 0
    %11 = vsyncpa [#allocation6], 0
    %12 = vsyncpa [#allocation4], 0
    // Predicated region
    $region2: #{tpu_custom_call.1} parent=1 // pred_check
      _
    $region3: #{tpu_custom_call.1} parent=1 // pred_check_branch
      %14 = sbr.rel (0) target = $region5
    $region4: #{tpu_custom_call.1} parent=1 // pred_region
      %s16 = ssub.s32 128, 128
      %17 = vsyncadd [#allocation3], %s16
      %s19 = sshll.u32 [#allocation2], 4
      %s20 = int_to_ptr.vmem [resolvable:$true] %s19
      %22 = dma.hbm_to_vmem [thread:$0]  %s0, 128, %s20, [#allocation3]
    $region5: #{tpu_custom_call.1} parent=1 // pred_fallthru
      _
    // Predicated region
    $region6: #{tpu_custom_call.1} parent=1 // pred_check
      _
    $region7: #{tpu_custom_call.1} parent=1 // pred_check_branch
      %24 = sbr.rel (0) target = $region9
    $region8: #{tpu_custom_call.1} parent=1 // pred_region
      %s26 = ssub.s32 2048, 2048
      %27 = vsyncadd [#allocation6], %s26
      %s28 = sshll.u32 [#allocation5], 4
      %s29 = int_to_ptr.vmem [resolvable:$true] %s28
      %34 = dma.hbm_to_vmem [thread:$0]  %s1, 2048, %s29, [#allocation6], 128, 128, 8
    $region9: #{tpu_custom_call.1} parent=1 // pred_fallthru
      _
    // Predicated region
    $region10: #{tpu_custom_call.1} parent=1 // pred_check
      _
    $region11: #{tpu_custom_call.1} parent=1 // pred_check_branch
      %36 = sbr.rel (0) target = $region13
    $region12: #{tpu_custom_call.1} parent=1 // pred_region
      _
    $region13: #{tpu_custom_call.1} parent=1 // pred_fallthru
      _
    // Predicated region
    $region14: #{tpu_custom_call.1} parent=1 // pred_check
      _
    $region15: #{tpu_custom_call.1} parent=1 // pred_check_branch
      %38 = sbr.rel (0) target = $region17
    $region16: #{tpu_custom_call.1} parent=1 // pred_region
      %s40 = ssub.s32 2048, 2048
      %41 = vsyncadd [#allocation6], %s40
      %s42 = sshll.u32 [#allocation7], 4
      %s43 = int_to_ptr.vmem [resolvable:$true] %s42
      %48 = dma.hbm_to_vmem [thread:$0]  %s3, 2048, %s43, [#allocation6], 128, 128, 8
    $region17: #{tpu_custom_call.1} parent=1 // pred_fallthru
      _
    // Predicated region
    $region18: #{tpu_custom_call.1} parent=1 // pred_check
      _
    $region19: #{tpu_custom_call.1} parent=1 // pred_check_branch
      %50 = sbr.rel (0) target = $region21
    $region20: #{tpu_custom_call.1} parent=1 // pred_region
      _
    $region21: #{tpu_custom_call.1} parent=1 // pred_fallthru
      _
    // Predicated region
    $region22: #{tpu_custom_call.1} parent=1 // pred_check
      _
    $region23: #{tpu_custom_call.1} parent=1 // pred_check_branch
      %52 = sbr.rel (0) target = $region25
    $region24: #{tpu_custom_call.1} parent=1 // pred_region
      %53 = dma.done [#allocation3], 128
    $region25: #{tpu_custom_call.1} parent=1 // pred_fallthru
      _
    // Predicated region
    $region26: #{tpu_custom_call.1} parent=1 // pred_check
      _
    $region27: #{tpu_custom_call.1} parent=1 // pred_check_branch
      %55 = sbr.rel (0) target = $region29
    $region28: #{tpu_custom_call.1} parent=1 // pred_region
      %56 = dma.done [#allocation6], 2048
    $region29: #{tpu_custom_call.1} parent=1 // pred_fallthru
      _
    // Predicated region
    $region30: #{tpu_custom_call.1} parent=1 // pred_check
      _
    $region31: #{tpu_custom_call.1} parent=1 // pred_check_branch
      %58 = sbr.rel (0) target = $region33
    $region32: #{tpu_custom_call.1} parent=1 // pred_region
      %59 = dma.done [#allocation6], 2048
    $region33: #{tpu_custom_call.1} parent=1 // pred_fallthru
      _
    %v60 = vld [vmem:[#allocation2] sm:$0xff]
    %v61 = vld [vmem:[#allocation5] sm:$0xff]
    %v62 = vld [vmem:[#allocation5 + $0x8] sm:$0xff]
    %v63 = vld [vmem:[#allocation5 + $0x10] sm:$0xff]
    %v64 = vld [vmem:[#allocation5 + $0x18] sm:$0xff]
    %v65 = vld [vmem:[#allocation5 + $0x20] sm:$0xff]
    %v66 = vld [vmem:[#allocation5 + $0x28] sm:$0xff]
    %v67 = vld [vmem:[#allocation5 + $0x30] sm:$0xff]
    %v68 = vld [vmem:[#allocation5 + $0x38] sm:$0xff]
    %v69 = vld [vmem:[#allocation5 + $0x40] sm:$0xff]
    %v70 = vld [vmem:[#allocation5 + $0x48] sm:$0xff]
    %v71 = vld [vmem:[#allocation5 + $0x50] sm:$0xff]
    %v72 = vld [vmem:[#allocation5 + $0x58] sm:$0xff]
    %v73 = vld [vmem:[#allocation5 + $0x60] sm:$0xff]
    %v74 = vld [vmem:[#allocation5 + $0x68] sm:$0xff]
    %v75 = vld [vmem:[#allocation5 + $0x70] sm:$0xff]
    %v76 = vld [vmem:[#allocation5 + $0x78] sm:$0xff]
    %v77 = vld [vmem:[%s2] sm:$0x1]
    %v79 = vlaneseq
    %v80 = vshrl.u32 %v79, 7
    %v81 = vsub.s32 0, %v80
    %v82 = vrot.slane %v77, %v81
    %84 = vmatprep.subr.mxu0 0.0
    %85 = vmatpush1.msra.mxu0 %v76
    %86 = vmatprep.subr.mxu0 0.0
    %87 = vmatpush1.msra.mxu0 %v75
    %88 = vmatprep.subr.mxu0 0.0
    %89 = vmatpush1.msra.mxu0 %v74
    %90 = vmatprep.subr.mxu0 0.0
    %91 = vmatpush1.msra.mxu0 %v73
    %92 = vmatprep.subr.mxu0 0.0
    %93 = vmatpush1.msra.mxu0 %v72
    %94 = vmatprep.subr.mxu0 0.0
    %95 = vmatpush1.msra.mxu0 %v71
    %96 = vmatprep.subr.mxu0 0.0
    %97 = vmatpush1.msra.mxu0 %v70
    %98 = vmatprep.subr.mxu0 0.0
    %99 = vmatpush1.msra.mxu0 %v69
    %100 = vmatprep.subr.mxu0 0.0
    %101 = vmatpush1.msra.mxu0 %v68
    %102 = vmatprep.subr.mxu0 0.0
    %103 = vmatpush1.msra.mxu0 %v67
    %104 = vmatprep.subr.mxu0 0.0
    %105 = vmatpush1.msra.mxu0 %v66
    %106 = vmatprep.subr.mxu0 0.0
    %107 = vmatpush1.msra.mxu0 %v65
    %108 = vmatprep.subr.mxu0 0.0
    %109 = vmatpush1.msra.mxu0 %v64
    %110 = vmatprep.subr.mxu0 0.0
    %111 = vmatpush1.msra.mxu0 %v63
    %112 = vmatprep.subr.mxu0 0.0
    %113 = vmatpush1.msra.mxu0 %v62
    %114 = vmatprep.subr.mxu0 0.0
    %115 = vmatpush1.msra.mxu0 %v61
    %116 = vmatprep.subr.mxu0 0.0
    %117 = vmatpush2.msra.mxu0 0.0
    %118 = vmatprep.subr.mxu0 0.0
    %119 = vmatpush2.msra.mxu0 0.0
    %120 = vmatprep.subr.mxu0 0.0
    %121 = vmatpush2.msra.mxu0 0.0
    %122 = vmatprep.subr.mxu0 0.0
    %123 = vmatpush2.msra.mxu0 0.0
    %124 = vmatprep.subr.mxu0 0.0
    %125 = vmatpush2.msra.mxu0 0.0
    %126 = vmatprep.subr.mxu0 0.0
    %127 = vmatpush2.msra.mxu0 0.0
    %128 = vmatprep.subr.mxu0 0.0
    %129 = vmatpush2.msra.mxu0 0.0
    %130 = vmatprep.subr.mxu0 0.0
    %131 = vmatpush2.msra.mxu0 0.0
    %132 = vmatprep.subr.mxu0 0.0
    %133 = vmatpush2.msra.mxu0 0.0
    %134 = vmatprep.subr.mxu0 0.0
    %135 = vmatpush2.msra.mxu0 0.0
    %136 = vmatprep.subr.mxu0 0.0
    %137 = vmatpush2.msra.mxu0 0.0
    %138 = vmatprep.subr.mxu0 0.0
    %139 = vmatpush2.msra.mxu0 0.0
    %140 = vmatprep.subr.mxu0 0.0
    %141 = vmatpush2.msra.mxu0 0.0
    %142 = vmatprep.subr.mxu0 0.0
    %143 = vmatpush2.msra.mxu0 0.0
    %144 = vmatprep.subr.mxu0 0.0
    %145 = vmatpush2.msra.mxu0 0.0
    %146 = vmatprep.subr.mxu0 0.0
    %147 = vmatpush2.msra.mxu0 0.0
    %148 = vmatprep.mubr.f32.mxu0 0.0
    %149 = vmatmul.mubr.f32.gmra.mxu0 %v60
    %v150 = vpop.f32.mrf.mxu0
    %v151 = vadd.f32 %v82, %v150
    %v152 = vpop.f32.mrf.mxu0
    %153 = vdwg.mxu0
    %vm154 = vcmp.gt.f32.partialorder %v151, 0.0
    %v155 = vmul.f32 %v151, 0.01
    %v156 = vsel %vm154, %v151, %v155
    %v157 = vld [vmem:[#allocation7] sm:$0xff]
    %v158 = vld [vmem:[#allocation7 + $0x8] sm:$0xff]
    %v159 = vld [vmem:[#allocation7 + $0x10] sm:$0xff]
    %v160 = vld [vmem:[#allocation7 + $0x18] sm:$0xff]
    %v161 = vld [vmem:[#allocation7 + $0x20] sm:$0xff]
    %v162 = vld [vmem:[#allocation7 + $0x28] sm:$0xff]
    %v163 = vld [vmem:[#allocation7 + $0x30] sm:$0xff]
    %v164 = vld [vmem:[#allocation7 + $0x38] sm:$0xff]
    %v165 = vld [vmem:[#allocation7 + $0x40] sm:$0xff]
    %v166 = vld [vmem:[#allocation7 + $0x48] sm:$0xff]
    %v167 = vld [vmem:[#allocation7 + $0x50] sm:$0xff]
    %v168 = vld [vmem:[#allocation7 + $0x58] sm:$0xff]
    %v169 = vld [vmem:[#allocation7 + $0x60] sm:$0xff]
    %v170 = vld [vmem:[#allocation7 + $0x68] sm:$0xff]
    %v171 = vld [vmem:[#allocation7 + $0x70] sm:$0xff]
    %v172 = vld [vmem:[#allocation7 + $0x78] sm:$0xff]
    %v173 = vld [vmem:[%s4] sm:$0x1]
    %v175 = vlaneseq
    %v176 = vshrl.u32 %v175, 7
    %v177 = vsub.s32 0, %v176
    %v178 = vrot.slane %v173, %v177
    %180 = vmatprep.subr.mxu0 0.0
    %181 = vmatpush1.msra.mxu0 %v172
    %182 = vmatprep.subr.mxu0 0.0
    %183 = vmatpush1.msra.mxu0 %v171
    %184 = vmatprep.subr.mxu0 0.0
    %185 = vmatpush1.msra.mxu0 %v170
    %186 = vmatprep.subr.mxu0 0.0
    %187 = vmatpush1.msra.mxu0 %v169
    %188 = vmatprep.subr.mxu0 0.0
    %189 = vmatpush1.msra.mxu0 %v168
    %190 = vmatprep.subr.mxu0 0.0
    %191 = vmatpush1.msra.mxu0 %v167
    %192 = vmatprep.subr.mxu0 0.0
    %193 = vmatpush1.msra.mxu0 %v166
    %194 = vmatprep.subr.mxu0 0.0
    %195 = vmatpush1.msra.mxu0 %v165
    %196 = vmatprep.subr.mxu0 0.0
    %197 = vmatpush1.msra.mxu0 %v164
    %198 = vmatprep.subr.mxu0 0.0
    %199 = vmatpush1.msra.mxu0 %v163
    %200 = vmatprep.subr.mxu0 0.0
    %201 = vmatpush1.msra.mxu0 %v162
    %202 = vmatprep.subr.mxu0 0.0
    %203 = vmatpush1.msra.mxu0 %v161
    %204 = vmatprep.subr.mxu0 0.0
    %205 = vmatpush1.msra.mxu0 %v160
    %206 = vmatprep.subr.mxu0 0.0
    %207 = vmatpush1.msra.mxu0 %v159
    %208 = vmatprep.subr.mxu0 0.0
    %209 = vmatpush1.msra.mxu0 %v158
    %210 = vmatprep.subr.mxu0 0.0
    %211 = vmatpush1.msra.mxu0 %v157
    %212 = vmatprep.subr.mxu0 0.0
    %213 = vmatpush2.msra.mxu0 0.0
    %214 = vmatprep.subr.mxu0 0.0
    %215 = vmatpush2.msra.mxu0 0.0
    %216 = vmatprep.subr.mxu0 0.0
    %217 = vmatpush2.msra.mxu0 0.0
    %218 = vmatprep.subr.mxu0 0.0
    %219 = vmatpush2.msra.mxu0 0.0
    %220 = vmatprep.subr.mxu0 0.0
    %221 = vmatpush2.msra.mxu0 0.0
    %222 = vmatprep.subr.mxu0 0.0
    %223 = vmatpush2.msra.mxu0 0.0
    %224 = vmatprep.subr.mxu0 0.0
    %225 = vmatpush2.msra.mxu0 0.0
    %226 = vmatprep.subr.mxu0 0.0
    %227 = vmatpush2.msra.mxu0 0.0
    %228 = vmatprep.subr.mxu0 0.0
    %229 = vmatpush2.msra.mxu0 0.0
    %230 = vmatprep.subr.mxu0 0.0
    %231 = vmatpush2.msra.mxu0 0.0
    %232 = vmatprep.subr.mxu0 0.0
    %233 = vmatpush2.msra.mxu0 0.0
    %234 = vmatprep.subr.mxu0 0.0
    %235 = vmatpush2.msra.mxu0 0.0
    %236 = vmatprep.subr.mxu0 0.0
    %237 = vmatpush2.msra.mxu0 0.0
    %238 = vmatprep.subr.mxu0 0.0
    %239 = vmatpush2.msra.mxu0 0.0
    %240 = vmatprep.subr.mxu0 0.0
    %241 = vmatpush2.msra.mxu0 0.0
    %242 = vmatprep.subr.mxu0 0.0
    %243 = vmatpush2.msra.mxu0 0.0
    %244 = vmatprep.mubr.f32.mxu0 0.0
    %245 = vmatmul.mubr.f32.gmra.mxu0 %v156
    %v246 = vpop.f32.mrf.mxu0
    %v247 = vadd.f32 %v178, %v246
    %v248 = vpop.f32.mrf.mxu0
    %249 = vdwg.mxu0
    %v250 = vmul.f32 %v60, 0.1
    %v251 = vadd.f32 %v247, %v250
    %vm252 = vcmp.gt.f32.partialorder %v251, 0.0
    %v253 = vmul.f32 %v251, 0.01
    %v254 = vsel %vm252, %v251, %v253
    %255 = vst [vmem:[#allocation8] sm:$0xff] %v254
    // Predicated region
    $region34: #{tpu_custom_call.1} parent=1 // pred_check
      _
    $region35: #{tpu_custom_call.1} parent=1 // pred_check_branch
      %257 = sbr.rel (0) target = $region37
    $region36: #{tpu_custom_call.1} parent=1 // pred_region
      %s259 = ssub.s32 128, 128
      %260 = vsyncadd [#allocation4], %s259
      %s262 = sshll.u32 [#allocation8], 4
      %s263 = int_to_ptr.vmem [resolvable:$true] %s262
      %265 = dma.vmem_to_hbm [thread:$0]  %s263, 128, %s5, [#allocation4]
    $region37: #{tpu_custom_call.1} parent=1 // pred_fallthru
      _
    // Predicated region
    $region38: #{tpu_custom_call.1} parent=1 // pred_check
      _
    $region39: #{tpu_custom_call.1} parent=1 // pred_check_branch
      %267 = sbr.rel (0) target = $region41
    $region40: #{tpu_custom_call.1} parent=1 // pred_region
      %268 = dma.done [#allocation4], 128
    $region41: #{tpu_custom_call.1} parent=1 // pred_fallthru
      _
    %269 = vsyncpa [#allocation3], 1
    %270 = vsyncpa [#allocation6], 1
    %271 = vsyncpa [#allocation4], 1

</llo_original>
